<compile_context>
chip_gen: v5e
topology: v5e:2x2
jax: 0.10.0
libtpu: 0.0.40
codegen_flags: <defaults>
</compile_context>

<pallas_src>
import jax
import jax.numpy as jnp
from jax import lax
from jax.experimental import pallas as pl
from jax.experimental.pallas import tpu as pltpu

BN_EPS = 1e-5


def _round_up(a, b):
    return (a + b - 1) // b * b


def conv_stats_kernel(p_ref, w_ref, y_ref, sum_ref, ssq_ref):
    # p_ref: [TM, Kp] bf16 patches, w_ref: [Kp, TN] bf16 weights
    y = jnp.dot(p_ref[...], w_ref[...], preferred_element_type=jnp.float32)  # [TM, TN] f32
    y_ref[...] = y
    s = jnp.sum(y, axis=0, keepdims=True)       # [1, TN] partial channel sum
    q = jnp.sum(y * y, axis=0, keepdims=True)   # [1, TN] partial channel sum-of-squares
    # replicate across 8 sublanes so the stats tile is (8, TN)-aligned (full vst)
    sum_ref[...] = jnp.broadcast_to(s, sum_ref.shape)
    ssq_ref[...] = jnp.broadcast_to(q, ssq_ref.shape)


def bn_relu_kernel(y_ref, scale_ref, shift_ref, o_ref):
    # per-channel scale/shift precomputed -> one mul + one add + max per element
    o_ref[...] = jnp.maximum(y_ref[...] * scale_ref[...] + shift_ref[...], 0.0)


@jax.jit
def conv_block_forward(x, weight, gamma, beta):
    """x: [B, Cin, H, W] f32, weight: [Cout, Cin, 4, 4], gamma/beta: [Cout]."""
    B, Cin, H, W = x.shape
    Cout = weight.shape[0]
    Ho, Wo = H // 2, W // 2
    KH = KW = 4
    K = Cin * KH * KW
    M = B * Ho * Wo

    # --- glue: NHWC reflect pad + im2col (rows already in M-major order, so no
    # big HBM transpose of the patch tensor is needed).
    # TODO(synk): extract the 4x4 stride-2 patches inside the kernel (manual DMA
    # of overlapping NHWC row windows) to remove the 4x im2col HBM duplication.
    x_nhwc = jnp.transpose(x, (0, 2, 3, 1))
    xp = jnp.pad(x_nhwc, ((0, 0), (1, 1), (1, 1), (0, 0)), mode="reflect")
    cols = [xp[:, kh:kh + 2 * Ho:2, kw:kw + 2 * Wo:2, :]
            for kh in range(KH) for kw in range(KW)]
    patches = jnp.stack(cols, axis=-1)                     # [B, Ho, Wo, Cin, 16]
    patches = patches.reshape(M, K)                        # K index = cin*16 + kh*4 + kw

    # --- lane-dense padding: K, Cout -> multiples of 128; M -> multiple of TM.
    K_p = _round_up(K, 128)
    Cout_p = _round_up(Cout, 128)
    TN = 256 if Cout_p % 256 == 0 else 128
    TM_TARGET = 512
    M_p = _round_up(M, 8)
    if M_p <= TM_TARGET:
        TM = M_p
    else:
        TM = TM_TARGET
        M_p = _round_up(M, TM)
    n_m = M_p // TM
    n_n = Cout_p // TN

    patches_p = jnp.pad(patches, ((0, M_p - M), (0, K_p - K))).astype(jnp.bfloat16)
    w2d = jnp.pad(weight.reshape(Cout, K).T.astype(jnp.float32),
                  ((0, K_p - K), (0, Cout_p - Cout))).astype(jnp.bfloat16)
    gamma_p = jnp.pad(gamma.astype(jnp.float32), (0, Cout_p - Cout), constant_values=1.0)
    beta_p = jnp.pad(beta.astype(jnp.float32), (0, Cout_p - Cout))

    cparams = pltpu.CompilerParams(
        dimension_semantics=("parallel", "parallel"),
        vmem_limit_bytes=32 * 1024 * 1024,
    )

    # --- pass 1: conv matmul + per-tile partial BN stats ---------------------
    y_full, psum, pssq = pl.pallas_call(
        conv_stats_kernel,
        out_shape=(
            jax.ShapeDtypeStruct((M_p, Cout_p), jnp.float32),
            jax.ShapeDtypeStruct((n_m * 8, Cout_p), jnp.float32),
            jax.ShapeDtypeStruct((n_m * 8, Cout_p), jnp.float32),
        ),
        grid=(n_m, n_n),
        in_specs=[
            pl.BlockSpec((TM, K_p), lambda i, j: (i, 0)),
            pl.BlockSpec((K_p, TN), lambda i, j: (0, j)),
        ],
        out_specs=(
            pl.BlockSpec((TM, TN), lambda i, j: (i, j)),
            pl.BlockSpec((8, TN), lambda i, j: (i, j)),
            pl.BlockSpec((8, TN), lambda i, j: (i, j)),
        ),
        compiler_params=cparams,
        cost_estimate=pl.CostEstimate(
            flops=2 * M_p * K_p * Cout_p,
            transcendentals=0,
            bytes_accessed=(M_p * K_p * 2 + n_m * K_p * Cout_p * 2 + M_p * Cout_p * 4),
        ),
    )(patches_p, w2d)

    # --- tiny JAX glue: fold BN into per-channel scale/shift (f32).
    # Padded rows/cols contribute exactly zero, so dividing by the true M is exact.
    tot_sum = jnp.sum(psum.reshape(n_m, 8, Cout_p)[:, 0, :], axis=0)
    tot_ssq = jnp.sum(pssq.reshape(n_m, 8, Cout_p)[:, 0, :], axis=0)
    mean = tot_sum / M
    var = jnp.maximum(tot_ssq / M - mean * mean, 0.0)
    inv = lax.rsqrt(var + BN_EPS)
    scale = (gamma_p * inv).reshape(1, Cout_p)
    shift = (beta_p - gamma_p * mean * inv).reshape(1, Cout_p)

    # --- pass 2: y * scale + shift, ReLU; written in place over y_full -------
    out2d = pl.pallas_call(
        bn_relu_kernel,
        out_shape=jax.ShapeDtypeStruct((M_p, Cout_p), jnp.float32),
        grid=(n_m, n_n),
        in_specs=[
            pl.BlockSpec((TM, TN), lambda i, j: (i, j)),
            pl.BlockSpec((1, TN), lambda i, j: (0, j)),
            pl.BlockSpec((1, TN), lambda i, j: (0, j)),
        ],
        out_specs=pl.BlockSpec((TM, TN), lambda i, j: (i, j)),
        input_output_aliases={0: 0},
        compiler_params=cparams,
    )(y_full, scale, shift)

    # strip padding, [M, Cout] (NHWC-major rows) -> NCHW
    out = out2d[:M, :Cout].reshape(B, Ho, Wo, Cout).transpose(0, 3, 1, 2)
    return out
    # TODO(synk): use_dropout=False default -> nn.Dropout path not exercised; a
    # training-mode dropout would use pltpu.prng_seed/stateful_bernoulli in pass 2.


def reference_forward(x, weight, gamma, beta):
    """Pure-JAX reference with the same numerics (bf16 conv inputs, f32 accum/BN)."""
    xp = jnp.pad(x, ((0, 0), (0, 0), (1, 1), (1, 1)), mode="reflect")
    y = lax.conv_general_dilated(
        xp.astype(jnp.bfloat16), weight.astype(jnp.bfloat16),
        window_strides=(2, 2), padding="VALID",
        dimension_numbers=("NCHW", "OIHW", "NCHW"),
        preferred_element_type=jnp.float32)
    mean = jnp.mean(y, axis=(0, 2, 3), keepdims=True)
    var = jnp.mean((y - mean) ** 2, axis=(0, 2, 3), keepdims=True)
    yn = (y - mean) * lax.rsqrt(var + BN_EPS)
    out = gamma.reshape(1, -1, 1, 1) * yn + beta.reshape(1, -1, 1, 1)
    return jnp.maximum(out, 0.0)


if __name__ == "__main__":
    B, Cin, Cout, H, W = 2, 4, 8, 16, 16

    key = jax.random.PRNGKey(0)
    kx, kw, kg, kb = jax.random.split(key, 4)

    x = jax.random.normal(kx, (B, Cin, H, W), dtype=jnp.float32)
    fan_in = Cin * 4 * 4
    bound = 1.0 / (fan_in ** 0.5)
    weight = jax.random.uniform(kw, (Cout, Cin, 4, 4), jnp.float32, -bound, bound)
    gamma = 1.0 + 0.1 * jax.random.normal(kg, (Cout,), dtype=jnp.float32)
    beta = 0.1 * jax.random.normal(kb, (Cout,), dtype=jnp.float32)

    out = jax.block_until_ready(conv_block_forward(x, weight, gamma, beta))
    ref = jax.block_until_ready(reference_forward(x, weight, gamma, beta))

    assert out.shape == (B, Cout, H // 2, W // 2), out.shape
    max_err = float(jnp.max(jnp.abs(out - ref)))
    assert jnp.allclose(out, ref, atol=2e-3, rtol=2e-3), max_err
    print("KERNEL_OK")
</pallas_src>

<mosaic_0001>
module attributes {stable_mosaic.version = 11 : i64} {
  func.func @conv_stats_kernel(%arg0: i32, %arg1: i32, %arg2: memref<128x128xbf16, #tpu.memory_space<vmem>>, %arg3: memref<128x128xbf16, #tpu.memory_space<vmem>>, %arg4: memref<128x128xf32, #tpu.memory_space<vmem>>, %arg5: memref<8x128xf32, #tpu.memory_space<vmem>>, %arg6: memref<8x128xf32, #tpu.memory_space<vmem>>) attributes {dimension_semantics = [#tpu.dimension_semantics<parallel>, #tpu.dimension_semantics<parallel>], iteration_bounds = array<i64: 1, 1>, scalar_prefetch = 0 : i64, scratch_operands = 0 : i64, tpu.core_type = #tpu.core_type<tc>, window_params = [{transform_indices = @transform_0, window_bounds = array<i64: 128, 128>}, {transform_indices = @transform_1, window_bounds = array<i64: 128, 128>}, {transform_indices = @transform_2, window_bounds = array<i64: 128, 128>}, {transform_indices = @transform_3, window_bounds = array<i64: 8, 128>}, {transform_indices = @transform_4, window_bounds = array<i64: 8, 128>}]} {
    %c0 = arith.constant 0 : index
    %c0_0 = arith.constant 0 : index
    %0 = vector.load %arg2[%c0, %c0_0] : memref<128x128xbf16, #tpu.memory_space<vmem>>, vector<128x128xbf16>
    %c0_1 = arith.constant 0 : index
    %c0_2 = arith.constant 0 : index
    %1 = vector.load %arg3[%c0_1, %c0_2] : memref<128x128xbf16, #tpu.memory_space<vmem>>, vector<128x128xbf16>
    %cst = arith.constant dense<0.000000e+00> : vector<128x128xf32>
    %2 = tpu.matmul %0, %1, %cst {dimension_numbers = #tpu.dot_dimension_numbers<[1], [0], [0], [1], [0, 0, 1, 1], [], []>} : vector<128x128xbf16>, vector<128x128xbf16>, vector<128x128xf32> -> vector<128x128xf32>
    %c0_3 = arith.constant 0 : index
    %c0_4 = arith.constant 0 : index
    %3 = vector.load %arg4[%c0_3, %c0_4] : memref<128x128xf32, #tpu.memory_space<vmem>>, vector<128x128xf32>
    tpu.vector_store %arg4[%c0_3, %c0_4], %2 {strides = array<i32>} : memref<128x128xf32, #tpu.memory_space<vmem>>, vector<128x128xf32>,
    %cst_5 = arith.constant dense<0.000000e+00> : vector<128xf32>
    %4 = vector.multi_reduction <add>, %2, %cst_5 [0] : vector<128x128xf32> to vector<128xf32>
    %5 = vector.shape_cast %4 : vector<128xf32> to vector<1x128xf32>
    %6 = arith.mulf %2, %2 : vector<128x128xf32>
    %cst_6 = arith.constant dense<0.000000e+00> : vector<128xf32>
    %7 = vector.multi_reduction <add>, %6, %cst_6 [0] : vector<128x128xf32> to vector<128xf32>
    %8 = vector.shape_cast %7 : vector<128xf32> to vector<1x128xf32>
    %9 = vector.shape_cast %5 : vector<1x128xf32> to vector<1x128xf32>
    %10 = vector.broadcast %9 : vector<1x128xf32> to vector<8x128xf32>
    %c0_7 = arith.constant 0 : index
    %c0_8 = arith.constant 0 : index
    %11 = vector.load %arg5[%c0_7, %c0_8] : memref<8x128xf32, #tpu.memory_space<vmem>>, vector<8x128xf32>
    tpu.vector_store %arg5[%c0_7, %c0_8], %10 {strides = array<i32>} : memref<8x128xf32, #tpu.memory_space<vmem>>, vector<8x128xf32>,
    %12 = vector.shape_cast %8 : vector<1x128xf32> to vector<1x128xf32>
    %13 = vector.broadcast %12 : vector<1x128xf32> to vector<8x128xf32>
    %c0_9 = arith.constant 0 : index
    %c0_10 = arith.constant 0 : index
    %14 = vector.load %arg6[%c0_9, %c0_10] : memref<8x128xf32, #tpu.memory_space<vmem>>, vector<8x128xf32>
    tpu.vector_store %arg6[%c0_9, %c0_10], %13 {strides = array<i32>} : memref<8x128xf32, #tpu.memory_space<vmem>>, vector<8x128xf32>,
    return
  }
  func.func @transform_0(%arg0: i32, %arg1: i32) -> (i32, i32) {
    %c0_i32 = arith.constant 0 : i32
    %c0_i32_0 = arith.constant 0 : i32
    return %arg0, %c0_i32 : i32, i32
  }
  func.func @transform_1(%arg0: i32, %arg1: i32) -> (i32, i32) {
    %c0_i32 = arith.constant 0 : i32
    %c0_i32_0 = arith.constant 0 : i32
    return %c0_i32, %arg1 : i32, i32
  }
  func.func @transform_2(%arg0: i32, %arg1: i32) -> (i32, i32) {
    %c0_i32 = arith.constant 0 : i32
    return %arg0, %arg1 : i32, i32
  }
  func.func @transform_3(%arg0: i32, %arg1: i32) -> (i32, i32) {
    %c0_i32 = arith.constant 0 : i32
    return %arg0, %arg1 : i32, i32
  }
  func.func @transform_4(%arg0: i32, %arg1: i32) -> (i32, i32) {
    %c0_i32 = arith.constant 0 : i32
    return %arg0, %arg1 : i32, i32
  }
}

module attributes {stable_mosaic.version = 11 : i64} {
  func.func @bn_relu_kernel(%arg0: i32, %arg1: i32, %arg2: memref<128x128xf32, #tpu.memory_space<vmem>>, %arg3: memref<1x128xf32, #tpu.memory_space<vmem>>, %arg4: memref<1x128xf32, #tpu.memory_space<vmem>>, %arg5: memref<128x128xf32, #tpu.memory_space<vmem>>) attributes {dimension_semantics = [#tpu.dimension_semantics<parallel>, #tpu.dimension_semantics<parallel>], iteration_bounds = array<i64: 1, 1>, scalar_prefetch = 0 : i64, scratch_operands = 0 : i64, tpu.core_type = #tpu.core_type<tc>, window_params = [{transform_indices = @transform_0, window_bounds = array<i64: 128, 128>}, {transform_indices = @transform_1, window_bounds = array<i64: 1, 128>}, {transform_indices = @transform_2, window_bounds = array<i64: 1, 128>}, {transform_indices = @transform_3, window_bounds = array<i64: 128, 128>}]} {
    %c0 = arith.constant 0 : index
    %c0_0 = arith.constant 0 : index
    %0 = vector.load %arg2[%c0, %c0_0] : memref<128x128xf32, #tpu.memory_space<vmem>>, vector<128x128xf32>
    %c0_1 = arith.constant 0 : index
    %c0_2 = arith.constant 0 : index
    %1 = vector.load %arg3[%c0_1, %c0_2] : memref<1x128xf32, #tpu.memory_space<vmem>>, vector<1x128xf32>
    %2 = vector.broadcast %1 : vector<1x128xf32> to vector<128x128xf32>
    %3 = arith.mulf %0, %2 : vector<128x128xf32>
    %c0_3 = arith.constant 0 : index
    %c0_4 = arith.constant 0 : index
    %4 = vector.load %arg4[%c0_3, %c0_4] : memref<1x128xf32, #tpu.memory_space<vmem>>, vector<1x128xf32>
    %5 = vector.broadcast %4 : vector<1x128xf32> to vector<128x128xf32>
    %6 = arith.addf %3, %5 : vector<128x128xf32>
    %cst = arith.constant 0.000000e+00 : f32
    %7 = vector.broadcast %cst : f32 to vector<128x128xf32>
    %8 = arith.maximumf %6, %7 : vector<128x128xf32>
    %c0_5 = arith.constant 0 : index
    %c0_6 = arith.constant 0 : index
    %9 = vector.load %arg5[%c0_5, %c0_6] : memref<128x128xf32, #tpu.memory_space<vmem>>, vector<128x128xf32>
    tpu.vector_store %arg5[%c0_5, %c0_6], %8 {strides = array<i32>} : memref<128x128xf32, #tpu.memory_space<vmem>>, vector<128x128xf32>,
    return
  }
  func.func @transform_0(%arg0: i32, %arg1: i32) -> (i32, i32) {
    %c0_i32 = arith.constant 0 : i32
    return %arg0, %arg1 : i32, i32
  }
  func.func @transform_1(%arg0: i32, %arg1: i32) -> (i32, i32) {
    %c0_i32 = arith.constant 0 : i32
    %c0_i32_0 = arith.constant 0 : i32
    return %c0_i32, %arg1 : i32, i32
  }
  func.func @transform_2(%arg0: i32, %arg1: i32) -> (i32, i32) {
    %c0_i32 = arith.constant 0 : i32
    %c0_i32_0 = arith.constant 0 : i32
    return %c0_i32, %arg1 : i32, i32
  }
  func.func @transform_3(%arg0: i32, %arg1: i32) -> (i32, i32) {
    %c0_i32 = arith.constant 0 : i32
    return %arg0, %arg1 : i32, i32
  }
}

</mosaic_0001>

<llo_original>
// kernel: conv_block_forward.3
$region0: #{conv_block_forward.3}
  #allocation0 [shape = 'u32[]', space=smem, size = 0x4, offset = 0x4, fixed_abs, tag = 'smem constant byte address 0x4 - core index']
  #allocation1 [shape = 'u32[72,128]{1,0:T(1,128)}', space=vmem, size = 0x9000, scoped, tag = 'internal scratch']
  %s0 = inlined_call_operand.vmem [shape: f32[128,128], index: 0, kind: input, shape index: {}, may-alias: {0,3}]
  %s1 = inlined_call_operand.vmem [shape: f32[1,128], index: 1, kind: input, shape index: {}]
  %s2 = inlined_call_operand.vmem [shape: f32[1,128], index: 2, kind: input, shape index: {}]
  %s3 = inlined_call_operand.vmem [shape: f32[128,128], index: 3, kind: output, shape index: {}, may-alias: {0,3}]
  %s4 = sld [smem:[#allocation0]]
  $region22: #{conv_block_forward.3} parent=0
    _
  %s6 = ssub.s32 1, %s4
  %s7 = scalar_select 0, %s6, %s4
  // Predicated region
  $region2: #{conv_block_forward.3} parent=0 // pred_check
    _
  $region3: #{conv_block_forward.3} parent=0 // pred_check_branch
    %9 = sbr.rel (0) target = $region5
  $region4: #{conv_block_forward.3} parent=0 // pred_region
    _
  $region5: #{conv_block_forward.3} parent=0 // pred_fallthru
    _
  // Predicated region
  $region6: #{conv_block_forward.3} parent=0 // pred_check
    _
  $region7: #{conv_block_forward.3} parent=0 // pred_check_branch
    %11 = sbr.rel (0) target = $region9
  $region8: #{conv_block_forward.3} parent=0 // pred_region
    _
  $region9: #{conv_block_forward.3} parent=0 // pred_fallthru
    _
  // Predicated region
  $region10: #{conv_block_forward.3} parent=0 // pred_check
    _
  $region11: #{conv_block_forward.3} parent=0 // pred_check_branch
    %13 = sbr.rel (0) target = $region13
  $region12: #{conv_block_forward.3} parent=0 // pred_region
    _
  $region13: #{conv_block_forward.3} parent=0 // pred_fallthru
    _
  %v14 = vld [vmem:[%s0] sm:$0xff]
  %v15 = vld [vmem:[%s0 + $0x8] sm:$0xff]
  %v16 = vld [vmem:[%s0 + $0x10] sm:$0xff]
  %v17 = vld [vmem:[%s0 + $0x18] sm:$0xff]
  %v18 = vld [vmem:[%s0 + $0x20] sm:$0xff]
  %v19 = vld [vmem:[%s0 + $0x28] sm:$0xff]
  %v20 = vld [vmem:[%s0 + $0x30] sm:$0xff]
  %v21 = vld [vmem:[%s0 + $0x38] sm:$0xff]
  %v22 = vld [vmem:[%s0 + $0x40] sm:$0xff]
  %v23 = vld [vmem:[%s0 + $0x48] sm:$0xff]
  %v24 = vld [vmem:[%s0 + $0x50] sm:$0xff]
  %v25 = vld [vmem:[%s0 + $0x58] sm:$0xff]
  %v26 = vld [vmem:[%s0 + $0x60] sm:$0xff]
  %v27 = vld [vmem:[%s0 + $0x68] sm:$0xff]
  %v28 = vld [vmem:[%s0 + $0x70] sm:$0xff]
  %v29 = vld [vmem:[%s0 + $0x78] sm:$0xff]
  %v30 = vld [vmem:[%s1] sm:$0x1]
  %v32 = vperm.slane %v30, 0
  %v34 = vmul.f32 %v14, %v32
  %v35 = vmul.f32 %v15, %v32
  %v36 = vmul.f32 %v16, %v32
  %v37 = vmul.f32 %v17, %v32
  %v38 = vmul.f32 %v18, %v32
  %v39 = vmul.f32 %v19, %v32
  %v40 = vmul.f32 %v20, %v32
  %v41 = vmul.f32 %v21, %v32
  %v42 = vmul.f32 %v22, %v32
  %v43 = vmul.f32 %v23, %v32
  %v44 = vmul.f32 %v24, %v32
  %v45 = vmul.f32 %v25, %v32
  %v46 = vmul.f32 %v26, %v32
  %v47 = vmul.f32 %v27, %v32
  %v48 = vmul.f32 %v28, %v32
  %v49 = vmul.f32 %v29, %v32
  %v50 = vld [vmem:[%s2] sm:$0x1]
  %v52 = vperm.slane %v50, 0
  %v54 = vadd.f32 %v34, %v52
  %v55 = vadd.f32 %v35, %v52
  %v56 = vadd.f32 %v36, %v52
  %v57 = vadd.f32 %v37, %v52
  %v58 = vadd.f32 %v38, %v52
  %v59 = vadd.f32 %v39, %v52
  %v60 = vadd.f32 %v40, %v52
  %v61 = vadd.f32 %v41, %v52
  %v62 = vadd.f32 %v42, %v52
  %v63 = vadd.f32 %v43, %v52
  %v64 = vadd.f32 %v44, %v52
  %v65 = vadd.f32 %v45, %v52
  %v66 = vadd.f32 %v46, %v52
  %v67 = vadd.f32 %v47, %v52
  %v68 = vadd.f32 %v48, %v52
  %v69 = vadd.f32 %v49, %v52
  %v70 = vmax.f32 %v54, 0.0
  %v71 = vmax.f32 %v55, 0.0
  %v72 = vmax.f32 %v56, 0.0
  %v73 = vmax.f32 %v57, 0.0
  %v74 = vmax.f32 %v58, 0.0
  %v75 = vmax.f32 %v59, 0.0
  %v76 = vmax.f32 %v60, 0.0
  %v77 = vmax.f32 %v61, 0.0
  %v78 = vmax.f32 %v62, 0.0
  %v79 = vmax.f32 %v63, 0.0
  %v80 = vmax.f32 %v64, 0.0
  %v81 = vmax.f32 %v65, 0.0
  %v82 = vmax.f32 %v66, 0.0
  %v83 = vmax.f32 %v67, 0.0
  %v84 = vmax.f32 %v68, 0.0
  %v85 = vmax.f32 %v69, 0.0
  %86 = vst [vmem:[%s3] sm:$0xff] %v70
  %87 = vst [vmem:[%s3 + $0x8] sm:$0xff] %v71
  %88 = vst [vmem:[%s3 + $0x10] sm:$0xff] %v72
  %89 = vst [vmem:[%s3 + $0x18] sm:$0xff] %v73
  %90 = vst [vmem:[%s3 + $0x20] sm:$0xff] %v74
  %91 = vst [vmem:[%s3 + $0x28] sm:$0xff] %v75
  %92 = vst [vmem:[%s3 + $0x30] sm:$0xff] %v76
  %93 = vst [vmem:[%s3 + $0x38] sm:$0xff] %v77
  %94 = vst [vmem:[%s3 + $0x40] sm:$0xff] %v78
  %95 = vst [vmem:[%s3 + $0x48] sm:$0xff] %v79
  %96 = vst [vmem:[%s3 + $0x50] sm:$0xff] %v80
  %97 = vst [vmem:[%s3 + $0x58] sm:$0xff] %v81
  %98 = vst [vmem:[%s3 + $0x60] sm:$0xff] %v82
  %99 = vst [vmem:[%s3 + $0x68] sm:$0xff] %v83
  %100 = vst [vmem:[%s3 + $0x70] sm:$0xff] %v84
  %101 = vst [vmem:[%s3 + $0x78] sm:$0xff] %v85
  // Predicated region
  $region14: #{conv_block_forward.3} parent=0 // pred_check
    _
  $region15: #{conv_block_forward.3} parent=0 // pred_check_branch
    %103 = sbr.rel (0) target = $region17
  $region16: #{conv_block_forward.3} parent=0 // pred_region
    _
  $region17: #{conv_block_forward.3} parent=0 // pred_fallthru
    _
  // Predicated region
  $region18: #{conv_block_forward.3} parent=0 // pred_check
    _
  $region19: #{conv_block_forward.3} parent=0 // pred_check_branch
    %105 = sbr.rel (0) target = $region21
  $region20: #{conv_block_forward.3} parent=0 // pred_region
    _
  $region21: #{conv_block_forward.3} parent=0 // pred_fallthru
    _

// kernel: conv_block_forward.2
$region0: #{conv_block_forward.2}
  #allocation0 [shape = 'u32[]', space=smem, size = 0x4, offset = 0x4, fixed_abs, tag = 'smem constant byte address 0x4 - core index']
  #allocation1 [shape = 'u32[72,128]{1,0:T(1,128)}', space=vmem, size = 0x9000, scoped, tag = 'internal scratch']
  %s0 = inlined_call_operand.vmem [shape: bf16[128,128], index: 0, kind: input, shape index: {}]
  %s1 = inlined_call_operand.vmem [shape: bf16[128,128], index: 1, kind: input, shape index: {}]
  %s2 = inlined_call_operand.vmem [shape: f32[128,128], index: 2, kind: output, shape index: {0}]
  %s3 = inlined_call_operand.vmem [shape: f32[8,128], index: 3, kind: output, shape index: {1}]
  %s4 = inlined_call_operand.vmem [shape: f32[8,128], index: 4, kind: output, shape index: {2}]
  %5 = xla_tuple %s2, %s3, %s4
  %s6 = sld [smem:[#allocation0]]
  $region34: #{conv_block_forward.2} parent=0
    _
  %s8 = ssub.s32 1, %s6
  %s9 = scalar_select 0, %s8, %s6
  // Predicated region
  $region2: #{conv_block_forward.2} parent=0 // pred_check
    _
  $region3: #{conv_block_forward.2} parent=0 // pred_check_branch
    %11 = sbr.rel (0) target = $region5
  $region4: #{conv_block_forward.2} parent=0 // pred_region
    _
  $region5: #{conv_block_forward.2} parent=0 // pred_fallthru
    _
  // Predicated region
  $region6: #{conv_block_forward.2} parent=0 // pred_check
    _
  $region7: #{conv_block_forward.2} parent=0 // pred_check_branch
    %13 = sbr.rel (0) target = $region9
  $region8: #{conv_block_forward.2} parent=0 // pred_region
    _
  $region9: #{conv_block_forward.2} parent=0 // pred_fallthru
    _
  %v14 = vld [vmem:[%s0] sm:$0xf]
  %v15 = vld [vmem:[%s0 + $0x4] sm:$0xf]
  %v16 = vld [vmem:[%s0 + $0x8] sm:$0xf]
  %v17 = vld [vmem:[%s0 + $0xc] sm:$0xf]
  %v18 = vld [vmem:[%s0 + $0x10] sm:$0xf]
  %v19 = vld [vmem:[%s0 + $0x14] sm:$0xf]
  %v20 = vld [vmem:[%s0 + $0x18] sm:$0xf]
  %v21 = vld [vmem:[%s0 + $0x1c] sm:$0xf]
  %v22 = vld [vmem:[%s0 + $0x20] sm:$0xf]
  %v23 = vld [vmem:[%s0 + $0x24] sm:$0xf]
  %v24 = vld [vmem:[%s0 + $0x28] sm:$0xf]
  %v25 = vld [vmem:[%s0 + $0x2c] sm:$0xf]
  %v26 = vld [vmem:[%s0 + $0x30] sm:$0xf]
  %v27 = vld [vmem:[%s0 + $0x34] sm:$0xf]
  %v28 = vld [vmem:[%s0 + $0x38] sm:$0xf]
  %v29 = vld [vmem:[%s0 + $0x3c] sm:$0xf]
  %v30 = vld [vmem:[%s1] sm:$0xf]
  %v31 = vld [vmem:[%s1 + $0x4] sm:$0xf]
  %v32 = vld [vmem:[%s1 + $0x8] sm:$0xf]
  %v33 = vld [vmem:[%s1 + $0xc] sm:$0xf]
  %v34 = vld [vmem:[%s1 + $0x10] sm:$0xf]
  %v35 = vld [vmem:[%s1 + $0x14] sm:$0xf]
  %v36 = vld [vmem:[%s1 + $0x18] sm:$0xf]
  %v37 = vld [vmem:[%s1 + $0x1c] sm:$0xf]
  %v38 = vld [vmem:[%s1 + $0x20] sm:$0xf]
  %v39 = vld [vmem:[%s1 + $0x24] sm:$0xf]
  %v40 = vld [vmem:[%s1 + $0x28] sm:$0xf]
  %v41 = vld [vmem:[%s1 + $0x2c] sm:$0xf]
  %v42 = vld [vmem:[%s1 + $0x30] sm:$0xf]
  %v43 = vld [vmem:[%s1 + $0x34] sm:$0xf]
  %v44 = vld [vmem:[%s1 + $0x38] sm:$0xf]
  %v45 = vld [vmem:[%s1 + $0x3c] sm:$0xf]
  %v62 = vunpack.c.l.b16 %v14
  %v63 = vunpack.c.l.b16 %v15
  %v64 = vunpack.c.l.b16 %v16
  %v65 = vunpack.c.l.b16 %v17
  %v66 = vunpack.c.l.b16 %v18
  %v67 = vunpack.c.l.b16 %v19
  %v68 = vunpack.c.l.b16 %v20
  %v69 = vunpack.c.l.b16 %v21
  %v70 = vunpack.c.l.b16 %v22
  %v71 = vunpack.c.l.b16 %v23
  %v72 = vunpack.c.l.b16 %v24
  %v73 = vunpack.c.l.b16 %v25
  %v74 = vunpack.c.l.b16 %v26
  %v75 = vunpack.c.l.b16 %v27
  %v76 = vunpack.c.l.b16 %v28
  %v77 = vunpack.c.l.b16 %v29
  %v78 = vpack.c.b16 %v63, %v62
  %v79 = vpack.c.b16 %v65, %v64
  %v80 = vpack.c.b16 %v67, %v66
  %v81 = vpack.c.b16 %v69, %v68
  %v82 = vpack.c.b16 %v71, %v70
  %v83 = vpack.c.b16 %v73, %v72
  %v84 = vpack.c.b16 %v75, %v74
  %v85 = vpack.c.b16 %v77, %v76
  %v110 = vunpack.c.l.b16 %v30
  %v111 = vunpack.c.l.b16 %v31
  %v112 = vunpack.c.l.b16 %v32
  %v113 = vunpack.c.l.b16 %v33
  %v114 = vunpack.c.l.b16 %v34
  %v115 = vunpack.c.l.b16 %v35
  %v116 = vunpack.c.l.b16 %v36
  %v117 = vunpack.c.l.b16 %v37
  %v118 = vunpack.c.l.b16 %v38
  %v119 = vunpack.c.l.b16 %v39
  %v120 = vunpack.c.l.b16 %v40
  %v121 = vunpack.c.l.b16 %v41
  %v122 = vunpack.c.l.b16 %v42
  %v123 = vunpack.c.l.b16 %v43
  %v124 = vunpack.c.l.b16 %v44
  %v125 = vunpack.c.l.b16 %v45
  %v126 = vpack.c.b16 %v111, %v110
  %v127 = vpack.c.b16 %v113, %v112
  %v128 = vpack.c.b16 %v115, %v114
  %v129 = vpack.c.b16 %v117, %v116
  %v130 = vpack.c.b16 %v119, %v118
  %v131 = vpack.c.b16 %v121, %v120
  %v132 = vpack.c.b16 %v123, %v122
  %v133 = vpack.c.b16 %v125, %v124
  %142 = vmatpush.bf16.msra.mxu0 %v133
  %143 = vmatpush.bf16.msra.mxu0 %v132
  %144 = vmatpush.bf16.msra.mxu0 %v131
  %145 = vmatpush.bf16.msra.mxu0 %v130
  %146 = vmatpush.bf16.msra.mxu0 %v129
  %147 = vmatpush.bf16.msra.mxu0 %v128
  %148 = vmatpush.bf16.msra.mxu0 %v127
  %149 = vmatpush.bf16.msra.mxu0 %v126
  %150 = vmatmul.bf16.gmra.mxu0 %v78
  %v151 = vpop.f32.mrf.mxu0
  %v152 = vadd.f32 0.0, %v151
  %v153 = vpop.f32.mrf.mxu0
  %v154 = vadd.f32 0.0, %v153
  %155 = vmatmul.bf16.gmra.mxu0 %v79
  %v156 = vpop.f32.mrf.mxu0
  %v157 = vadd.f32 0.0, %v156
  %v158 = vpop.f32.mrf.mxu0
  %v159 = vadd.f32 0.0, %v158
  %160 = vmatmul.bf16.gmra.mxu0 %v80
  %v161 = vpop.f32.mrf.mxu0
  %v162 = vadd.f32 0.0, %v161
  %v163 = vpop.f32.mrf.mxu0
  %v164 = vadd.f32 0.0, %v163
  %165 = vmatmul.bf16.gmra.mxu0 %v81
  %v166 = vpop.f32.mrf.mxu0
  %v167 = vadd.f32 0.0, %v166
  %v168 = vpop.f32.mrf.mxu0
  %v169 = vadd.f32 0.0, %v168
  %170 = vmatmul.bf16.gmra.mxu0 %v82
  %v171 = vpop.f32.mrf.mxu0
  %v172 = vadd.f32 0.0, %v171
  %v173 = vpop.f32.mrf.mxu0
  %v174 = vadd.f32 0.0, %v173
  %175 = vmatmul.bf16.gmra.mxu0 %v83
  %v176 = vpop.f32.mrf.mxu0
  %v177 = vadd.f32 0.0, %v176
  %v178 = vpop.f32.mrf.mxu0
  %v179 = vadd.f32 0.0, %v178
  %180 = vmatmul.bf16.gmra.mxu0 %v84
  %v181 = vpop.f32.mrf.mxu0
  %v182 = vadd.f32 0.0, %v181
  %v183 = vpop.f32.mrf.mxu0
  %v184 = vadd.f32 0.0, %v183
  %185 = vmatmul.bf16.gmra.mxu0 %v85
  %v186 = vpop.f32.mrf.mxu0
  %v187 = vadd.f32 0.0, %v186
  %v188 = vpop.f32.mrf.mxu0
  %v189 = vadd.f32 0.0, %v188
  %190 = vdwg.mxu0
  %191 = vst [vmem:[%s2] sm:$0xff] %v152
  %192 = vst [vmem:[%s2 + $0x8] sm:$0xff] %v154
  %193 = vst [vmem:[%s2 + $0x10] sm:$0xff] %v157
  %194 = vst [vmem:[%s2 + $0x18] sm:$0xff] %v159
  %195 = vst [vmem:[%s2 + $0x20] sm:$0xff] %v162
  %196 = vst [vmem:[%s2 + $0x28] sm:$0xff] %v164
  %197 = vst [vmem:[%s2 + $0x30] sm:$0xff] %v167
  %198 = vst [vmem:[%s2 + $0x38] sm:$0xff] %v169
  %199 = vst [vmem:[%s2 + $0x40] sm:$0xff] %v172
  %200 = vst [vmem:[%s2 + $0x48] sm:$0xff] %v174
  %201 = vst [vmem:[%s2 + $0x50] sm:$0xff] %v177
  %202 = vst [vmem:[%s2 + $0x58] sm:$0xff] %v179
  %203 = vst [vmem:[%s2 + $0x60] sm:$0xff] %v182
  %204 = vst [vmem:[%s2 + $0x68] sm:$0xff] %v184
  %205 = vst [vmem:[%s2 + $0x70] sm:$0xff] %v187
  %206 = vst [vmem:[%s2 + $0x78] sm:$0xff] %v189
  %v207 = vadd.f32 %v152, %v154
  %v208 = vadd.f32 %v207, %v157
  %v209 = vadd.f32 %v208, %v159
  %v210 = vadd.f32 %v209, %v162
  %v211 = vadd.f32 %v210, %v164
  %v212 = vadd.f32 %v211, %v167
  %v213 = vadd.f32 %v212, %v169
  %v214 = vadd.f32 %v213, %v172
  %v215 = vadd.f32 %v214, %v174
  %v216 = vadd.f32 %v215, %v177
  %v217 = vadd.f32 %v216, %v179
  %v218 = vadd.f32 %v217, %v182
  %v219 = vadd.f32 %v218, %v184
  %v220 = vadd.f32 %v219, %v187
  %v221 = vadd.f32 %v220, %v189
  %v222 = vrot.slane %v221, 4
  %v223 = vadd.f32 %v221, %v222
  %v224 = vrot.slane %v223, 2
  %v225 = vadd.f32 %v223, %v224
  %v226 = vrot.slane %v225, 1
  %v227 = vadd.f32 %v225, %v226
  %v228 = vmul.f32 %v152, %v152
  %v229 = vmul.f32 %v154, %v154
  %v230 = vmul.f32 %v157, %v157
  %v231 = vmul.f32 %v159, %v159
  %v232 = vmul.f32 %v162, %v162
  %v233 = vmul.f32 %v164, %v164
  %v234 = vmul.f32 %v167, %v167
  %v235 = vmul.f32 %v169, %v169
  %v236 = vmul.f32 %v172, %v172
  %v237 = vmul.f32 %v174, %v174
  %v238 = vmul.f32 %v177, %v177
  %v239 = vmul.f32 %v179, %v179
  %v240 = vmul.f32 %v182, %v182
  %v241 = vmul.f32 %v184, %v184
  %v242 = vmul.f32 %v187, %v187
  %v243 = vmul.f32 %v189, %v189
  %v244 = vadd.f32 %v228, %v229
  %v245 = vadd.f32 %v244, %v230
  %v246 = vadd.f32 %v245, %v231
  %v247 = vadd.f32 %v246, %v232
  %v248 = vadd.f32 %v247, %v233
  %v249 = vadd.f32 %v248, %v234
  %v250 = vadd.f32 %v249, %v235
  %v251 = vadd.f32 %v250, %v236
  %v252 = vadd.f32 %v251, %v237
  %v253 = vadd.f32 %v252, %v238
  %v254 = vadd.f32 %v253, %v239
  %v255 = vadd.f32 %v254, %v240
  %v256 = vadd.f32 %v255, %v241
  %v257 = vadd.f32 %v256, %v242
  %v258 = vadd.f32 %v257, %v243
  %v259 = vrot.slane %v258, 4
  %v260 = vadd.f32 %v258, %v259
  %v261 = vrot.slane %v260, 2
  %v262 = vadd.f32 %v260, %v261
  %v263 = vrot.slane %v262, 1
  %v264 = vadd.f32 %v262, %v263
  %265 = vst [vmem:[%s3] sm:$0xff] %v227
  %266 = vst [vmem:[%s4] sm:$0xff] %v264
  // Predicated region
  $region10: #{conv_block_forward.2} parent=0 // pred_check
    _
  $region11: #{conv_block_forward.2} parent=0 // pred_check_branch
    %268 = sbr.rel (0) target = $region13
  $region12: #{conv_block_forward.2} parent=0 // pred_region
    _
  $region13: #{conv_block_forward.2} parent=0 // pred_fallthru
    _
  // Predicated region
  $region14: #{conv_block_forward.2} parent=0 // pred_check
    _
  $region15: #{conv_block_forward.2} parent=0 // pred_check_branch
    %270 = sbr.rel (0) target = $region17
  $region16: #{conv_block_forward.2} parent=0 // pred_region
    _
  $region17: #{conv_block_forward.2} parent=0 // pred_fallthru
    _
  // Predicated region
  $region18: #{conv_block_forward.2} parent=0 // pred_check
    _
  $region19: #{conv_block_forward.2} parent=0 // pred_check_branch
    %272 = sbr.rel (0) target = $region21
  $region20: #{conv_block_forward.2} parent=0 // pred_region
    _
  $region21: #{conv_block_forward.2} parent=0 // pred_fallthru
    _
  // Predicated region
  $region22: #{conv_block_forward.2} parent=0 // pred_check
    _
  $region23: #{conv_block_forward.2} parent=0 // pred_check_branch
    %274 = sbr.rel (0) target = $region25
  $region24: #{conv_block_forward.2} parent=0 // pred_region
    _
  $region25: #{conv_block_forward.2} parent=0 // pred_fallthru
    _
  // Predicated region
  $region26: #{conv_block_forward.2} parent=0 // pred_check
    _
  $region27: #{conv_block_forward.2} parent=0 // pred_check_branch
    %276 = sbr.rel (0) target = $region29
  $region28: #{conv_block_forward.2} parent=0 // pred_region
    _
  $region29: #{conv_block_forward.2} parent=0 // pred_fallthru
    _
  // Predicated region
  $region30: #{conv_block_forward.2} parent=0 // pred_check
    _
  $region31: #{conv_block_forward.2} parent=0 // pred_check_branch
    %278 = sbr.rel (0) target = $region33
  $region32: #{conv_block_forward.2} parent=0 // pred_region
    _
  $region33: #{conv_block_forward.2} parent=0 // pred_fallthru
    _

</llo_original>
